<compile_context>
chip_gen: v7x
topology: tpu7x:2x2x1
jax: 0.10.0
libtpu: 0.0.40
codegen_flags: <defaults>
</compile_context>

<pallas_src>
import functools

import jax
import jax.numpy as jnp
from jax import lax
from jax.experimental import pallas as pl
from jax.experimental.pallas import tpu as pltpu

# ---- static problem configuration (mirrors LearnedRobustLoss.__init__) --------
PENALTY_FACTOR = 10.0   # config['ltune']['penalty_factor']
NUM_SYS_FEATS  = 8      # LCM system feature columns (z0, z1, q, w, B, s, E, mem_budget)
MEM_BUDGET_IDX = 7      # lcm_schema.feat_cols().index('mem_budget')
NUM_CAT_FEATS  = 12     # categorical tail of the tuner output (size-ratio one-hots)
HIDDEN         = 32     # synthetic LCM hidden width
NUM_COSTS      = 4      # LCM output heads
LCM_IN_DIM     = NUM_SYS_FEATS + 1 + NUM_CAT_FEATS  # sys_label ++ bpe ++ categorical


def _round_up(x, m):
    return ((x + m - 1) // m) * m


def _robust_loss_kernel(pred_ref, label_ref,
                        w1s_ref, w1t_ref, w1b_ref, b1_ref,
                        w2_ref, b2_ref, w3_ref, b3_ref,
                        out_ref,
                        acc_sp_ref, acc_el_ref, acc_l2_ref, acc_u1_ref, acc_u2_ref,
                        *,
                        penalty_factor, num_sys_feats, mem_budget_idx,
                        tile_rows, batch):
    i = pl.program_id(0)
    nt = pl.num_programs(0)

    # ---- init accumulators on the first tile ----------------------------------
    @pl.when(i == 0)
    def _():
        z = jnp.zeros((1, 1), jnp.float32)
        acc_sp_ref[...] = z
        acc_el_ref[...] = z
        acc_l2_ref[...] = z
        acc_u1_ref[...] = z
        acc_u2_ref[...] = z

    pred = pred_ref[...].astype(jnp.float32)    # [TB, 3 + num_cat]
    label = label_ref[...].astype(jnp.float32)  # [TB, num_sys + 1]

    # ---- split_tuner_out -------------------------------------------------------
    eta  = pred[:, 0:1]            # [TB, 1]
    lamb = pred[:, 1:2]            # [TB, 1]
    bpe  = pred[:, 2:3]            # [TB, 1]
    tail = pred[:, 2:]             # [TB, 1 + num_cat]  (= [bpe, categorical])

    f = num_sys_feats
    sys_label = label[:, :f]                                    # [TB, num_sys]
    rho       = label[:, f:f + 1]                               # [TB, 1]
    mem_budget = sys_label[:, mem_budget_idx:mem_budget_idx+1]  # [TB, 1]

    # ---- calc_mem_penalty (same assignment order as torch) --------------------
    zero = jnp.zeros_like(bpe)
    penalty = jnp.where(bpe >= mem_budget, penalty_factor * (bpe - mem_budget), zero)
    penalty = jnp.where(bpe < 0.0, penalty_factor * (zero - bpe), penalty)
    bpe_c = jnp.where(bpe > mem_budget, mem_budget, bpe)
    bpe_c = jnp.where(bpe_c < 0.0, zero, bpe_c)

    # ---- lcm(concat([sys_label, bpe_c, cat])) as two MXU pushes ----------------
    # dot over [bpe, cat] uses raw bpe; the (bpe_c - bpe) * w1_row8 term swaps in the
    # clamped value (same math as concatenating bpe_c).
    h1 = jnp.dot(sys_label, w1s_ref[...], preferred_element_type=jnp.float32)
    h1 = h1 + jnp.dot(tail, w1t_ref[...], preferred_element_type=jnp.float32)
    h1 = h1 + (bpe_c - bpe) * w1b_ref[...]
    h1 = jnp.maximum(h1 + b1_ref[...], 0.0)
    h2 = jnp.dot(h1, w2_ref[...], preferred_element_type=jnp.float32) + b2_ref[...]
    h2 = jnp.maximum(h2, 0.0)
    m = jnp.dot(h2, w3_ref[...], preferred_element_type=jnp.float32) + b3_ref[...]  # [TB, C]

    # ---- (out - eta) / lamb -> kl_div_conj -> sum(dim=-1) ----------------------
    inv_lamb = pl.reciprocal(lamb, approx=False)                # [TB, 1]
    x = (m - eta) * inv_lamb
    s = jnp.sum(jnp.exp(x) - 1.0, axis=-1, keepdims=True)       # [TB, 1]
    u = rho + s                                                  # [TB, 1]

    # ---- tile-local partial sums (masked for padded rows) ----------------------
    row = i * tile_rows + lax.broadcasted_iota(jnp.int32, (tile_rows, 1), 0)
    valid = row < batch

    def msum(v):
        return jnp.sum(jnp.where(valid, v, 0.0), axis=0, keepdims=True)  # (1, 1)

    acc_sp_ref[...] += msum(eta * eta + penalty)   # sum(eta^2 + penalty)
    acc_el_ref[...] += msum(eta * lamb)            # sum(eta * lamb)
    acc_l2_ref[...] += msum(lamb * lamb)           # sum(lamb^2)
    acc_u1_ref[...] += msum(u)                     # S1 = sum(u)
    acc_u2_ref[...] += msum(u * u)                 # S2 = sum(u^2)

    # ---- finalize on the last tile ---------------------------------------------
    # torch: out = eta + lamb*rho + lamb*s, where rho/s broadcast [B,1]x[B] -> [B,B];
    # mean over B^2 entries of (t^2 + penalty_i) reduces to the closed form below.
    @pl.when(i == nt - 1)
    def _():
        bf = jnp.float32(batch)
        total = (bf * acc_sp_ref[...]
                 + 2.0 * acc_u1_ref[...] * acc_el_ref[...]
                 + acc_u2_ref[...] * acc_l2_ref[...])
        out_ref[...] = total / (bf * bf)


def learned_robust_loss(pred, label, params, *, tile_rows=None):
    """Pallas wrapper. pred: [B, 3+NUM_CAT_FEATS], label: [B, NUM_SYS_FEATS+1]."""
    w1, b1, w2, b2, w3, b3 = params
    B = pred.shape[0]
    f = NUM_SYS_FEATS

    # Batch tiling: multiple of 8 sublanes; 512 rows keeps double-buffered input
    # tiles (each row pads to 128 lanes -> 512 B/row/tensor) far under the scoped
    # VMEM limit on every generation (incl. v7x's 64 MiB).
    if tile_rows is None:
        tile_rows = min(512, _round_up(B, 8))
    tile_rows = max(8, _round_up(tile_rows, 8))
    padded_B = _round_up(B, tile_rows)
    nt = padded_B // tile_rows

    if padded_B != B:
        padn = padded_B - B
        pred_pad = jnp.zeros((padn, pred.shape[1]), pred.dtype).at[:, 1].set(1.0)  # lamb=1
        label_pad = jnp.ones((padn, label.shape[1]), label.dtype)
        pred = jnp.concatenate([pred, pred_pad], axis=0)
        label = jnp.concatenate([label, label_pad], axis=0)

    # First layer split so the kernel never concatenates along lanes.
    w1_sys  = w1[:f]            # [num_sys, H]
    w1_tail = w1[f:]            # [1 + num_cat, H]  (bpe row first, then categorical)
    w1_bpe  = w1[f:f + 1]       # [1, H]

    args = (pred, label,
            w1_sys, w1_tail, w1_bpe, b1.reshape(1, -1),
            w2, b2.reshape(1, -1), w3, b3.reshape(1, -1))

    kernel = functools.partial(
        _robust_loss_kernel,
        penalty_factor=PENALTY_FACTOR,
        num_sys_feats=NUM_SYS_FEATS,
        mem_budget_idx=MEM_BUDGET_IDX,
        tile_rows=tile_rows,
        batch=B,
    )

    in_specs = [
        pl.BlockSpec((tile_rows, pred.shape[1]), lambda i: (i, 0)),
        pl.BlockSpec((tile_rows, label.shape[1]), lambda i: (i, 0)),
    ] + [pl.BlockSpec(a.shape, lambda i: (0, 0)) for a in args[2:]]  # weights resident

    weight_elems = sum(int(a.size) for a in args[2:])
    flops = 2 * padded_B * (LCM_IN_DIM * HIDDEN + HIDDEN * HIDDEN + HIDDEN * NUM_COSTS) \
        + 64 * padded_B
    transcendentals = padded_B * (NUM_COSTS + 1)
    bytes_accessed = 4 * (padded_B * (pred.shape[1] + label.shape[1]) + weight_elems + 1)

    out = pl.pallas_call(
        kernel,
        out_shape=jax.ShapeDtypeStruct((1, 1), jnp.float32),
        grid=(nt,),
        in_specs=in_specs,
        out_specs=pl.BlockSpec((1, 1), lambda i: (0, 0)),
        scratch_shapes=[pltpu.VMEM((1, 1), jnp.float32)] * 5,
        compiler_params=pltpu.CompilerParams(
            dimension_semantics=("arbitrary",),
            vmem_limit_bytes=32 * 1024 * 1024,
        ),
        cost_estimate=pl.CostEstimate(
            flops=flops,
            transcendentals=transcendentals,
            bytes_accessed=bytes_accessed,
        ),
    )(*args)
    return out[0, 0]


def reference_loss(pred, label, params):
    """Pure-JAX replica of the torch forward (for verification)."""
    w1, b1, w2, b2, w3, b3 = params
    eta, lamb, bpe, cat = pred[:, 0:1], pred[:, 1:2], pred[:, 2:3], pred[:, 3:]
    f = NUM_SYS_FEATS
    sys_label = label[:, :f]
    rho = label[:, f]                                           # [B] (no view(-1,1) in torch)
    mem_budget = sys_label[:, MEM_BUDGET_IDX:MEM_BUDGET_IDX + 1]

    penalty = jnp.zeros_like(bpe)
    penalty = jnp.where(bpe >= mem_budget, PENALTY_FACTOR * (bpe - mem_budget), penalty)
    penalty = jnp.where(bpe < 0.0, PENALTY_FACTOR * (0.0 - bpe), penalty)
    bpe_c = jnp.where(bpe > mem_budget, mem_budget, bpe)
    bpe_c = jnp.where(bpe_c < 0.0, 0.0, bpe_c)

    inputs = jnp.concatenate([sys_label, bpe_c, cat], axis=-1)
    hp = lax.Precision.HIGHEST
    h1 = jax.nn.relu(jnp.dot(inputs, w1, precision=hp) + b1)
    h2 = jax.nn.relu(jnp.dot(h1, w2, precision=hp) + b2)
    m = jnp.dot(h2, w3, precision=hp) + b3

    out = (m - eta) / lamb
    out = jnp.exp(out) - 1.0
    out = out.sum(axis=-1)                     # [B]
    out = eta + lamb * rho + lamb * out        # [B,1] op [B] -> [B,B] (torch broadcast)
    out = jnp.square(out) + penalty            # + [B,1]
    return out.mean()


if __name__ == "__main__":
    B = 8
    key = jax.random.PRNGKey(0)
    k_pred, k_label, k_w = jax.random.split(key, 3)

    kp = jax.random.split(k_pred, 4)
    eta = 0.1 * jax.random.normal(kp[0], (B, 1), jnp.float32)
    lamb = jnp.abs(jax.random.normal(kp[1], (B, 1), jnp.float32)) + 0.5
    bpe = jax.random.uniform(kp[2], (B, 1), jnp.float32, minval=-1.0, maxval=8.0)
    cat = jax.random.uniform(kp[3], (B, NUM_CAT_FEATS), jnp.float32)
    pred = jnp.concatenate([eta, lamb, bpe, cat], axis=-1)          # [8, 15]

    kl = jax.random.split(k_label, 3)
    sys_feats = jax.random.uniform(kl[0], (B, NUM_SYS_FEATS), jnp.float32, 0.0, 2.0)
    sys_feats = sys_feats.at[:, MEM_BUDGET_IDX].set(
        jax.random.uniform(kl[1], (B,), jnp.float32, minval=3.0, maxval=6.0))
    rho = jax.random.uniform(kl[2], (B, 1), jnp.float32, minval=0.0, maxval=1.0)
    label = jnp.concatenate([sys_feats, rho], axis=-1)              # [8, 9]

    kw = jax.random.split(k_w, 6)
    scale = 0.1
    w1 = scale * jax.random.normal(kw[0], (LCM_IN_DIM, HIDDEN), jnp.float32)
    b1 = scale * jax.random.normal(kw[1], (HIDDEN,), jnp.float32)
    w2 = scale * jax.random.normal(kw[2], (HIDDEN, HIDDEN), jnp.float32)
    b2 = scale * jax.random.normal(kw[3], (HIDDEN,), jnp.float32)
    w3 = scale * jax.random.normal(kw[4], (HIDDEN, NUM_COSTS), jnp.float32)
    b3 = scale * jax.random.normal(kw[5], (NUM_COSTS,), jnp.float32)
    params = (w1, b1, w2, b2, w3, b3)

    out = learned_robust_loss(pred, label, params)
    out = jax.block_until_ready(out)

    ref = reference_loss(pred, label, params)
    assert jnp.isfinite(out), out
    assert jnp.allclose(out, ref, rtol=2e-2, atol=2e-2), (out, ref)
    print("KERNEL_OK")
</pallas_src>

<mosaic_0001>
module attributes {stable_mosaic.version = 11 : i64} {
  func.func @_robust_loss_kernel(%arg0: i32, %arg1: memref<8x15xf32, #tpu.memory_space<vmem>>, %arg2: memref<8x9xf32, #tpu.memory_space<vmem>>, %arg3: memref<8x32xf32, #tpu.memory_space<vmem>>, %arg4: memref<13x32xf32, #tpu.memory_space<vmem>>, %arg5: memref<1x32xf32, #tpu.memory_space<vmem>>, %arg6: memref<1x32xf32, #tpu.memory_space<vmem>>, %arg7: memref<32x32xf32, #tpu.memory_space<vmem>>, %arg8: memref<1x32xf32, #tpu.memory_space<vmem>>, %arg9: memref<32x4xf32, #tpu.memory_space<vmem>>, %arg10: memref<1x4xf32, #tpu.memory_space<vmem>>, %arg11: memref<1x1xf32, #tpu.memory_space<vmem>>, %arg12: memref<1x1xf32, #tpu.memory_space<vmem>>, %arg13: memref<1x1xf32, #tpu.memory_space<vmem>>, %arg14: memref<1x1xf32, #tpu.memory_space<vmem>>, %arg15: memref<1x1xf32, #tpu.memory_space<vmem>>, %arg16: memref<1x1xf32, #tpu.memory_space<vmem>>) attributes {dimension_semantics = [#tpu.dimension_semantics<arbitrary>], iteration_bounds = array<i64: 1>, scalar_prefetch = 0 : i64, scratch_operands = 5 : i64, tpu.core_type = #tpu.core_type<tc>, window_params = [{transform_indices = @transform_0, window_bounds = array<i64: 8, 15>}, {transform_indices = @transform_1, window_bounds = array<i64: 8, 9>}, {pipeline_mode = #tpu.pipeline_mode<synchronous>, transform_indices = @transform_2, window_bounds = array<i64: 8, 32>}, {pipeline_mode = #tpu.pipeline_mode<synchronous>, transform_indices = @transform_3, window_bounds = array<i64: 13, 32>}, {pipeline_mode = #tpu.pipeline_mode<synchronous>, transform_indices = @transform_4, window_bounds = array<i64: 1, 32>}, {pipeline_mode = #tpu.pipeline_mode<synchronous>, transform_indices = @transform_5, window_bounds = array<i64: 1, 32>}, {pipeline_mode = #tpu.pipeline_mode<synchronous>, transform_indices = @transform_6, window_bounds = array<i64: 32, 32>}, {pipeline_mode = #tpu.pipeline_mode<synchronous>, transform_indices = @transform_7, window_bounds = array<i64: 1, 32>}, {pipeline_mode = #tpu.pipeline_mode<synchronous>, transform_indices = @transform_8, window_bounds = array<i64: 32, 4>}, {pipeline_mode = #tpu.pipeline_mode<synchronous>, transform_indices = @transform_9, window_bounds = array<i64: 1, 4>}, {pipeline_mode = #tpu.pipeline_mode<synchronous>, transform_indices = @transform_10, window_bounds = array<i64: 1, 1>}]} {
    %c0_i32 = arith.constant 0 : i32
    %0 = arith.cmpi eq, %arg0, %c0_i32 : i32
    %1 = arith.extui %0 : i1 to i32
    %c0_i32_0 = arith.constant 0 : i32
    %2 = arith.cmpi ne, %1, %c0_i32_0 : i32
    scf.if %2 {
      %cst_65 = arith.constant 0.000000e+00 : f32
      %117 = vector.broadcast %cst_65 : f32 to vector<1x1xf32>
      %c0_66 = arith.constant 0 : index
      %c0_67 = arith.constant 0 : index
      %118 = vector.load %arg12[%c0_66, %c0_67] : memref<1x1xf32, #tpu.memory_space<vmem>>, vector<1x1xf32>
      tpu.vector_store %arg12[%c0_66, %c0_67], %117 {strides = array<i32>} : memref<1x1xf32, #tpu.memory_space<vmem>>, vector<1x1xf32>,
      %c0_68 = arith.constant 0 : index
      %c0_69 = arith.constant 0 : index
      %119 = vector.load %arg13[%c0_68, %c0_69] : memref<1x1xf32, #tpu.memory_space<vmem>>, vector<1x1xf32>
      tpu.vector_store %arg13[%c0_68, %c0_69], %117 {strides = array<i32>} : memref<1x1xf32, #tpu.memory_space<vmem>>, vector<1x1xf32>,
      %c0_70 = arith.constant 0 : index
      %c0_71 = arith.constant 0 : index
      %120 = vector.load %arg14[%c0_70, %c0_71] : memref<1x1xf32, #tpu.memory_space<vmem>>, vector<1x1xf32>
      tpu.vector_store %arg14[%c0_70, %c0_71], %117 {strides = array<i32>} : memref<1x1xf32, #tpu.memory_space<vmem>>, vector<1x1xf32>,
      %c0_72 = arith.constant 0 : index
      %c0_73 = arith.constant 0 : index
      %121 = vector.load %arg15[%c0_72, %c0_73] : memref<1x1xf32, #tpu.memory_space<vmem>>, vector<1x1xf32>
      tpu.vector_store %arg15[%c0_72, %c0_73], %117 {strides = array<i32>} : memref<1x1xf32, #tpu.memory_space<vmem>>, vector<1x1xf32>,
      %c0_74 = arith.constant 0 : index
      %c0_75 = arith.constant 0 : index
      %122 = vector.load %arg16[%c0_74, %c0_75] : memref<1x1xf32, #tpu.memory_space<vmem>>, vector<1x1xf32>
      tpu.vector_store %arg16[%c0_74, %c0_75], %117 {strides = array<i32>} : memref<1x1xf32, #tpu.memory_space<vmem>>, vector<1x1xf32>,
    } else {
    }
    %c0 = arith.constant 0 : index
    %c0_1 = arith.constant 0 : index
    %3 = vector.load %arg1[%c0, %c0_1] : memref<8x15xf32, #tpu.memory_space<vmem>>, vector<8x15xf32>
    %c0_2 = arith.constant 0 : index
    %c0_3 = arith.constant 0 : index
    %4 = vector.load %arg2[%c0_2, %c0_3] : memref<8x9xf32, #tpu.memory_space<vmem>>, vector<8x9xf32>
    %5 = vector.extract_strided_slice %3 {offsets = [0, 0], sizes = [8, 1], strides = [1, 1]} : vector<8x15xf32> to vector<8x1xf32>
    %6 = vector.extract_strided_slice %3 {offsets = [0, 1], sizes = [8, 1], strides = [1, 1]} : vector<8x15xf32> to vector<8x1xf32>
    %7 = vector.extract_strided_slice %3 {offsets = [0, 2], sizes = [8, 1], strides = [1, 1]} : vector<8x15xf32> to vector<8x1xf32>
    %8 = vector.extract_strided_slice %3 {offsets = [0, 2], sizes = [8, 13], strides = [1, 1]} : vector<8x15xf32> to vector<8x13xf32>
    %9 = vector.extract_strided_slice %4 {offsets = [0, 0], sizes = [8, 8], strides = [1, 1]} : vector<8x9xf32> to vector<8x8xf32>
    %10 = vector.extract_strided_slice %4 {offsets = [0, 8], sizes = [8, 1], strides = [1, 1]} : vector<8x9xf32> to vector<8x1xf32>
    %11 = vector.extract_strided_slice %9 {offsets = [0, 7], sizes = [8, 1], strides = [1, 1]} : vector<8x8xf32> to vector<8x1xf32>
    %cst = arith.constant 0.000000e+00 : f32
    %12 = vector.broadcast %cst : f32 to vector<8x1xf32>
    %13 = arith.cmpf oge, %7, %11 : vector<8x1xf32>
    %14 = arith.subf %7, %11 : vector<8x1xf32>
    %cst_4 = arith.constant 1.000000e+01 : f32
    %15 = vector.broadcast %cst_4 : f32 to vector<8x1xf32>
    %16 = arith.mulf %15, %14 : vector<8x1xf32>
    %17 = arith.select %13, %16, %12 : vector<8x1xi1>, vector<8x1xf32>
    %cst_5 = arith.constant 0.000000e+00 : f32
    %18 = vector.broadcast %cst_5 : f32 to vector<8x1xf32>
    %19 = arith.cmpf olt, %7, %18 : vector<8x1xf32>
    %20 = arith.subf %12, %7 : vector<8x1xf32>
    %cst_6 = arith.constant 1.000000e+01 : f32
    %21 = vector.broadcast %cst_6 : f32 to vector<8x1xf32>
    %22 = arith.mulf %21, %20 : vector<8x1xf32>
    %23 = arith.select %19, %22, %17 : vector<8x1xi1>, vector<8x1xf32>
    %24 = arith.cmpf ogt, %7, %11 : vector<8x1xf32>
    %25 = arith.select %24, %11, %7 : vector<8x1xi1>, vector<8x1xf32>
    %cst_7 = arith.constant 0.000000e+00 : f32
    %26 = vector.broadcast %cst_7 : f32 to vector<8x1xf32>
    %27 = arith.cmpf olt, %25, %26 : vector<8x1xf32>
    %28 = arith.select %27, %12, %25 : vector<8x1xi1>, vector<8x1xf32>
    %c0_8 = arith.constant 0 : index
    %c0_9 = arith.constant 0 : index
    %29 = vector.load %arg3[%c0_8, %c0_9] : memref<8x32xf32, #tpu.memory_space<vmem>>, vector<8x32xf32>
    %cst_10 = arith.constant dense<0.000000e+00> : vector<8x32xf32>
    %30 = tpu.matmul %9, %29, %cst_10 {dimension_numbers = #tpu.dot_dimension_numbers<[1], [0], [0], [1], [0, 0, 1, 1], [], []>} : vector<8x8xf32>, vector<8x32xf32>, vector<8x32xf32> -> vector<8x32xf32>
    %c0_11 = arith.constant 0 : index
    %c0_12 = arith.constant 0 : index
    %31 = vector.load %arg4[%c0_11, %c0_12] : memref<13x32xf32, #tpu.memory_space<vmem>>, vector<13x32xf32>
    %cst_13 = arith.constant dense<0.000000e+00> : vector<8x32xf32>
    %32 = tpu.matmul %8, %31, %cst_13 {dimension_numbers = #tpu.dot_dimension_numbers<[1], [0], [0], [1], [0, 0, 1, 1], [], []>} : vector<8x13xf32>, vector<13x32xf32>, vector<8x32xf32> -> vector<8x32xf32>
    %33 = arith.addf %30, %32 : vector<8x32xf32>
    %34 = arith.subf %28, %7 : vector<8x1xf32>
    %c0_14 = arith.constant 0 : index
    %c0_15 = arith.constant 0 : index
    %35 = vector.load %arg5[%c0_14, %c0_15] : memref<1x32xf32, #tpu.memory_space<vmem>>, vector<1x32xf32>
    %36 = vector.broadcast %34 : vector<8x1xf32> to vector<8x32xf32>
    %37 = vector.broadcast %35 : vector<1x32xf32> to vector<8x32xf32>
    %38 = arith.mulf %36, %37 : vector<8x32xf32>
    %39 = arith.addf %33, %38 : vector<8x32xf32>
    %c0_16 = arith.constant 0 : index
    %c0_17 = arith.constant 0 : index
    %40 = vector.load %arg6[%c0_16, %c0_17] : memref<1x32xf32, #tpu.memory_space<vmem>>, vector<1x32xf32>
    %41 = vector.broadcast %40 : vector<1x32xf32> to vector<8x32xf32>
    %42 = arith.addf %39, %41 : vector<8x32xf32>
    %cst_18 = arith.constant 0.000000e+00 : f32
    %43 = vector.broadcast %cst_18 : f32 to vector<8x32xf32>
    %44 = arith.maximumf %42, %43 : vector<8x32xf32>
    %c0_19 = arith.constant 0 : index
    %c0_20 = arith.constant 0 : index
    %45 = vector.load %arg7[%c0_19, %c0_20] : memref<32x32xf32, #tpu.memory_space<vmem>>, vector<32x32xf32>
    %cst_21 = arith.constant dense<0.000000e+00> : vector<8x32xf32>
    %46 = tpu.matmul %44, %45, %cst_21 {dimension_numbers = #tpu.dot_dimension_numbers<[1], [0], [0], [1], [0, 0, 1, 1], [], []>} : vector<8x32xf32>, vector<32x32xf32>, vector<8x32xf32> -> vector<8x32xf32>
    %c0_22 = arith.constant 0 : index
    %c0_23 = arith.constant 0 : index
    %47 = vector.load %arg8[%c0_22, %c0_23] : memref<1x32xf32, #tpu.memory_space<vmem>>, vector<1x32xf32>
    %48 = vector.broadcast %47 : vector<1x32xf32> to vector<8x32xf32>
    %49 = arith.addf %46, %48 : vector<8x32xf32>
    %cst_24 = arith.constant 0.000000e+00 : f32
    %50 = vector.broadcast %cst_24 : f32 to vector<8x32xf32>
    %51 = arith.maximumf %49, %50 : vector<8x32xf32>
    %c0_25 = arith.constant 0 : index
    %c0_26 = arith.constant 0 : index
    %52 = vector.load %arg9[%c0_25, %c0_26] : memref<32x4xf32, #tpu.memory_space<vmem>>, vector<32x4xf32>
    %cst_27 = arith.constant dense<0.000000e+00> : vector<8x4xf32>
    %53 = tpu.matmul %51, %52, %cst_27 {dimension_numbers = #tpu.dot_dimension_numbers<[1], [0], [0], [1], [0, 0, 1, 1], [], []>} : vector<8x32xf32>, vector<32x4xf32>, vector<8x4xf32> -> vector<8x4xf32>
    %c0_28 = arith.constant 0 : index
    %c0_29 = arith.constant 0 : index
    %54 = vector.load %arg10[%c0_28, %c0_29] : memref<1x4xf32, #tpu.memory_space<vmem>>, vector<1x4xf32>
    %55 = vector.broadcast %54 : vector<1x4xf32> to vector<8x4xf32>
    %56 = arith.addf %53, %55 : vector<8x4xf32>
    %57 = tpu.reciprocal %6 : vector<8x1xf32> -> vector<8x1xf32>
    %58 = vector.broadcast %5 : vector<8x1xf32> to vector<8x4xf32>
    %59 = arith.subf %56, %58 : vector<8x4xf32>
    %60 = vector.broadcast %57 : vector<8x1xf32> to vector<8x4xf32>
    %61 = arith.mulf %59, %60 : vector<8x4xf32>
    %62 = math.exp %61 : vector<8x4xf32>
    %cst_30 = arith.constant 1.000000e+00 : f32
    %63 = vector.broadcast %cst_30 : f32 to vector<8x4xf32>
    %64 = arith.subf %62, %63 : vector<8x4xf32>
    %cst_31 = arith.constant dense<0.000000e+00> : vector<8xf32>
    %65 = vector.multi_reduction <add>, %64, %cst_31 [1] : vector<8x4xf32> to vector<8xf32>
    %66 = vector.shape_cast %65 : vector<8xf32> to vector<8x1xf32>
    %67 = arith.addf %10, %66 : vector<8x1xf32>
    %c8_i32 = arith.constant 8 : i32
    %68 = arith.muli %arg0, %c8_i32 : i32
    %69 = tpu.iota {dimensions = array<i32: 0>} : vector<8x1xi32>
    %70 = vector.broadcast %68 : i32 to vector<8x1xi32>
    %71 = arith.addi %70, %69 : vector<8x1xi32>
    %c8_i32_32 = arith.constant 8 : i32
    %72 = vector.broadcast %c8_i32_32 : i32 to vector<8x1xi32>
    %73 = arith.cmpi slt, %71, %72 : vector<8x1xi32>
    %c0_33 = arith.constant 0 : index
    %c0_34 = arith.constant 0 : index
    %74 = vector.load %arg12[%c0_33, %c0_34] : memref<1x1xf32, #tpu.memory_space<vmem>>, vector<1x1xf32>
    %75 = arith.mulf %5, %5 : vector<8x1xf32>
    %76 = arith.addf %75, %23 : vector<8x1xf32>
    %cst_35 = arith.constant 0.000000e+00 : f32
    %77 = vector.broadcast %cst_35 : f32 to vector<8x1xf32>
    %78 = arith.select %73, %76, %77 : vector<8x1xi1>, vector<8x1xf32>
    %cst_36 = arith.constant dense<0.000000e+00> : vector<1xf32>
    %79 = vector.multi_reduction <add>, %78, %cst_36 [0] : vector<8x1xf32> to vector<1xf32>
    %80 = vector.shape_cast %79 : vector<1xf32> to vector<1x1xf32>
    %81 = arith.addf %74, %80 : vector<1x1xf32>
    %c0_37 = arith.constant 0 : index
    %c0_38 = arith.constant 0 : index
    %82 = vector.load %arg12[%c0_37, %c0_38] : memref<1x1xf32, #tpu.memory_space<vmem>>, vector<1x1xf32>
    tpu.vector_store %arg12[%c0_37, %c0_38], %81 {strides = array<i32>} : memref<1x1xf32, #tpu.memory_space<vmem>>, vector<1x1xf32>,
    %c0_39 = arith.constant 0 : index
    %c0_40 = arith.constant 0 : index
    %83 = vector.load %arg13[%c0_39, %c0_40] : memref<1x1xf32, #tpu.memory_space<vmem>>, vector<1x1xf32>
    %84 = arith.mulf %5, %6 : vector<8x1xf32>
    %cst_41 = arith.constant 0.000000e+00 : f32
    %85 = vector.broadcast %cst_41 : f32 to vector<8x1xf32>
    %86 = arith.select %73, %84, %85 : vector<8x1xi1>, vector<8x1xf32>
    %cst_42 = arith.constant dense<0.000000e+00> : vector<1xf32>
    %87 = vector.multi_reduction <add>, %86, %cst_42 [0] : vector<8x1xf32> to vector<1xf32>
    %88 = vector.shape_cast %87 : vector<1xf32> to vector<1x1xf32>
    %89 = arith.addf %83, %88 : vector<1x1xf32>
    %c0_43 = arith.constant 0 : index
    %c0_44 = arith.constant 0 : index
    %90 = vector.load %arg13[%c0_43, %c0_44] : memref<1x1xf32, #tpu.memory_space<vmem>>, vector<1x1xf32>
    tpu.vector_store %arg13[%c0_43, %c0_44], %89 {strides = array<i32>} : memref<1x1xf32, #tpu.memory_space<vmem>>, vector<1x1xf32>,
    %c0_45 = arith.constant 0 : index
    %c0_46 = arith.constant 0 : index
    %91 = vector.load %arg14[%c0_45, %c0_46] : memref<1x1xf32, #tpu.memory_space<vmem>>, vector<1x1xf32>
    %92 = arith.mulf %6, %6 : vector<8x1xf32>
    %cst_47 = arith.constant 0.000000e+00 : f32
    %93 = vector.broadcast %cst_47 : f32 to vector<8x1xf32>
    %94 = arith.select %73, %92, %93 : vector<8x1xi1>, vector<8x1xf32>
    %cst_48 = arith.constant dense<0.000000e+00> : vector<1xf32>
    %95 = vector.multi_reduction <add>, %94, %cst_48 [0] : vector<8x1xf32> to vector<1xf32>
    %96 = vector.shape_cast %95 : vector<1xf32> to vector<1x1xf32>
    %97 = arith.addf %91, %96 : vector<1x1xf32>
    %c0_49 = arith.constant 0 : index
    %c0_50 = arith.constant 0 : index
    %98 = vector.load %arg14[%c0_49, %c0_50] : memref<1x1xf32, #tpu.memory_space<vmem>>, vector<1x1xf32>
    tpu.vector_store %arg14[%c0_49, %c0_50], %97 {strides = array<i32>} : memref<1x1xf32, #tpu.memory_space<vmem>>, vector<1x1xf32>,
    %c0_51 = arith.constant 0 : index
    %c0_52 = arith.constant 0 : index
    %99 = vector.load %arg15[%c0_51, %c0_52] : memref<1x1xf32, #tpu.memory_space<vmem>>, vector<1x1xf32>
    %cst_53 = arith.constant 0.000000e+00 : f32
    %100 = vector.broadcast %cst_53 : f32 to vector<8x1xf32>
    %101 = arith.select %73, %67, %100 : vector<8x1xi1>, vector<8x1xf32>
    %cst_54 = arith.constant dense<0.000000e+00> : vector<1xf32>
    %102 = vector.multi_reduction <add>, %101, %cst_54 [0] : vector<8x1xf32> to vector<1xf32>
    %103 = vector.shape_cast %102 : vector<1xf32> to vector<1x1xf32>
    %104 = arith.addf %99, %103 : vector<1x1xf32>
    %c0_55 = arith.constant 0 : index
    %c0_56 = arith.constant 0 : index
    %105 = vector.load %arg15[%c0_55, %c0_56] : memref<1x1xf32, #tpu.memory_space<vmem>>, vector<1x1xf32>
    tpu.vector_store %arg15[%c0_55, %c0_56], %104 {strides = array<i32>} : memref<1x1xf32, #tpu.memory_space<vmem>>, vector<1x1xf32>,
    %c0_57 = arith.constant 0 : index
    %c0_58 = arith.constant 0 : index
    %106 = vector.load %arg16[%c0_57, %c0_58] : memref<1x1xf32, #tpu.memory_space<vmem>>, vector<1x1xf32>
    %107 = arith.mulf %67, %67 : vector<8x1xf32>
    %cst_59 = arith.constant 0.000000e+00 : f32
    %108 = vector.broadcast %cst_59 : f32 to vector<8x1xf32>
    %109 = arith.select %73, %107, %108 : vector<8x1xi1>, vector<8x1xf32>
    %cst_60 = arith.constant dense<0.000000e+00> : vector<1xf32>
    %110 = vector.multi_reduction <add>, %109, %cst_60 [0] : vector<8x1xf32> to vector<1xf32>
    %111 = vector.shape_cast %110 : vector<1xf32> to vector<1x1xf32>
    %112 = arith.addf %106, %111 : vector<1x1xf32>
    %c0_61 = arith.constant 0 : index
    %c0_62 = arith.constant 0 : index
    %113 = vector.load %arg16[%c0_61, %c0_62] : memref<1x1xf32, #tpu.memory_space<vmem>>, vector<1x1xf32>
    tpu.vector_store %arg16[%c0_61, %c0_62], %112 {strides = array<i32>} : memref<1x1xf32, #tpu.memory_space<vmem>>, vector<1x1xf32>,
    %c0_i32_63 = arith.constant 0 : i32
    %114 = arith.cmpi eq, %arg0, %c0_i32_63 : i32
    %115 = arith.extui %114 : i1 to i32
    %c0_i32_64 = arith.constant 0 : i32
    %116 = arith.cmpi ne, %115, %c0_i32_64 : i32
    scf.if %116 {
      %c0_65 = arith.constant 0 : index
      %c0_66 = arith.constant 0 : index
      %117 = vector.load %arg12[%c0_65, %c0_66] : memref<1x1xf32, #tpu.memory_space<vmem>>, vector<1x1xf32>
      %cst_67 = arith.constant 8.000000e+00 : f32
      %118 = vector.broadcast %cst_67 : f32 to vector<1x1xf32>
      %119 = arith.mulf %118, %117 : vector<1x1xf32>
      %c0_68 = arith.constant 0 : index
      %c0_69 = arith.constant 0 : index
      %120 = vector.load %arg15[%c0_68, %c0_69] : memref<1x1xf32, #tpu.memory_space<vmem>>, vector<1x1xf32>
      %cst_70 = arith.constant 2.000000e+00 : f32
      %121 = vector.broadcast %cst_70 : f32 to vector<1x1xf32>
      %122 = arith.mulf %121, %120 : vector<1x1xf32>
      %c0_71 = arith.constant 0 : index
      %c0_72 = arith.constant 0 : index
      %123 = vector.load %arg13[%c0_71, %c0_72] : memref<1x1xf32, #tpu.memory_space<vmem>>, vector<1x1xf32>
      %124 = arith.mulf %122, %123 : vector<1x1xf32>
      %125 = arith.addf %119, %124 : vector<1x1xf32>
      %c0_73 = arith.constant 0 : index
      %c0_74 = arith.constant 0 : index
      %126 = vector.load %arg16[%c0_73, %c0_74] : memref<1x1xf32, #tpu.memory_space<vmem>>, vector<1x1xf32>
      %c0_75 = arith.constant 0 : index
      %c0_76 = arith.constant 0 : index
      %127 = vector.load %arg14[%c0_75, %c0_76] : memref<1x1xf32, #tpu.memory_space<vmem>>, vector<1x1xf32>
      %128 = arith.mulf %126, %127 : vector<1x1xf32>
      %129 = arith.addf %125, %128 : vector<1x1xf32>
      %cst_77 = arith.constant 8.000000e+00 : f32
      %cst_78 = arith.constant 8.000000e+00 : f32
      %130 = arith.mulf %cst_77, %cst_78 : f32
      %131 = vector.broadcast %130 : f32 to vector<1x1xf32>
      %132 = arith.divf %129, %131 : vector<1x1xf32>
      %c0_79 = arith.constant 0 : index
      %c0_80 = arith.constant 0 : index
      %133 = vector.load %arg11[%c0_79, %c0_80] : memref<1x1xf32, #tpu.memory_space<vmem>>, vector<1x1xf32>
      tpu.vector_store %arg11[%c0_79, %c0_80], %132 {strides = array<i32>} : memref<1x1xf32, #tpu.memory_space<vmem>>, vector<1x1xf32>,
    } else {
    }
    return
  }
  func.func @transform_0(%arg0: i32) -> (i32, i32) {
    %c0_i32 = arith.constant 0 : i32
    %c0_i32_0 = arith.constant 0 : i32
    return %arg0, %c0_i32 : i32, i32
  }
  func.func @transform_1(%arg0: i32) -> (i32, i32) {
    %c0_i32 = arith.constant 0 : i32
    %c0_i32_0 = arith.constant 0 : i32
    return %arg0, %c0_i32 : i32, i32
  }
  func.func @transform_2(%arg0: i32) -> (i32, i32) {
    %c0_i32 = arith.constant 0 : i32
    %c0_i32_0 = arith.constant 0 : i32
    %c0_i32_1 = arith.constant 0 : i32
    return %c0_i32, %c0_i32_0 : i32, i32
  }
  func.func @transform_3(%arg0: i32) -> (i32, i32) {
    %c0_i32 = arith.constant 0 : i32
    %c0_i32_0 = arith.constant 0 : i32
    %c0_i32_1 = arith.constant 0 : i32
    return %c0_i32, %c0_i32_0 : i32, i32
  }
  func.func @transform_4(%arg0: i32) -> (i32, i32) {
    %c0_i32 = arith.constant 0 : i32
    %c0_i32_0 = arith.constant 0 : i32
    %c0_i32_1 = arith.constant 0 : i32
    return %c0_i32, %c0_i32_0 : i32, i32
  }
  func.func @transform_5(%arg0: i32) -> (i32, i32) {
    %c0_i32 = arith.constant 0 : i32
    %c0_i32_0 = arith.constant 0 : i32
    %c0_i32_1 = arith.constant 0 : i32
    return %c0_i32, %c0_i32_0 : i32, i32
  }
  func.func @transform_6(%arg0: i32) -> (i32, i32) {
    %c0_i32 = arith.constant 0 : i32
    %c0_i32_0 = arith.constant 0 : i32
    %c0_i32_1 = arith.constant 0 : i32
    return %c0_i32, %c0_i32_0 : i32, i32
  }
  func.func @transform_7(%arg0: i32) -> (i32, i32) {
    %c0_i32 = arith.constant 0 : i32
    %c0_i32_0 = arith.constant 0 : i32
    %c0_i32_1 = arith.constant 0 : i32
    return %c0_i32, %c0_i32_0 : i32, i32
  }
  func.func @transform_8(%arg0: i32) -> (i32, i32) {
    %c0_i32 = arith.constant 0 : i32
    %c0_i32_0 = arith.constant 0 : i32
    %c0_i32_1 = arith.constant 0 : i32
    return %c0_i32, %c0_i32_0 : i32, i32
  }
  func.func @transform_9(%arg0: i32) -> (i32, i32) {
    %c0_i32 = arith.constant 0 : i32
    %c0_i32_0 = arith.constant 0 : i32
    %c0_i32_1 = arith.constant 0 : i32
    return %c0_i32, %c0_i32_0 : i32, i32
  }
  func.func @transform_10(%arg0: i32) -> (i32, i32) {
    %c0_i32 = arith.constant 0 : i32
    %c0_i32_0 = arith.constant 0 : i32
    %c0_i32_1 = arith.constant 0 : i32
    return %c0_i32, %c0_i32_0 : i32, i32
  }
}

</mosaic_0001>

<llo_original>
// kernel: tpu_custom_call.1
$region0: #{tpu_custom_call.1}
  #allocation0 [shape = 'u32[]', space=smem, size = 0x4, offset = 0x4, fixed_abs, tag = 'smem constant byte address 0x4 - core index']
  #allocation1 [shape = 'u32[144,128]{1,0:T(1,128)}', space=vmem, size = 0x12000, scoped, tag = 'internal scratch']
  #allocation2 [shape = 'f32[1,1]{1,0:T(1,128)}', space=vmem, size = 0x200, scoped, tag = 'scratch operand']
  #allocation3 [shape = 'f32[1,1]{1,0:T(1,128)}', space=vmem, size = 0x200, scoped, tag = 'scratch operand']
  #allocation4 [shape = 'f32[1,1]{1,0:T(1,128)}', space=vmem, size = 0x200, scoped, tag = 'scratch operand']
  #allocation5 [shape = 'f32[1,1]{1,0:T(1,128)}', space=vmem, size = 0x200, scoped, tag = 'scratch operand']
  #allocation6 [shape = 'f32[1,1]{1,0:T(1,128)}', space=vmem, size = 0x200, scoped, tag = 'scratch operand']
  %s0 = inlined_call_operand.vmem [shape: f32[8,15], index: 0, kind: input, shape index: {}]
  %s1 = inlined_call_operand.hbm [shape: f32[8,9], index: 1, kind: input, shape index: {}]
  %s2 = inlined_call_operand.hbm [shape: f32[8,32], index: 2, kind: input, shape index: {}]
  %s3 = inlined_call_operand.vmem [shape: f32[13,32], index: 3, kind: input, shape index: {}]
  %s4 = inlined_call_operand.vmem [shape: f32[1,32], index: 4, kind: input, shape index: {}]
  %s5 = inlined_call_operand.vmem [shape: f32[1,32], index: 5, kind: input, shape index: {}]
  %s6 = inlined_call_operand.vmem [shape: f32[32,32], index: 6, kind: input, shape index: {}]
  %s7 = inlined_call_operand.hbm [shape: f32[1,32], index: 7, kind: input, shape index: {}]
  %s8 = inlined_call_operand.vmem [shape: f32[32,4], index: 8, kind: input, shape index: {}]
  %s9 = inlined_call_operand.vmem [shape: f32[1,4], index: 9, kind: input, shape index: {}]
  %s10 = inlined_call_operand.hbm [shape: f32[1,1], index: 10, kind: output, shape index: {}]
  %s11 = sld [smem:[#allocation0]]
  $region70: #{tpu_custom_call.1} parent=0
    _
  %s13 = ssub.s32 1, %s11
  %s14 = scalar_select 0, %s13, %s11
  $region1: #{tpu_custom_call.1} parent=0
    #allocation7 [shape = 'u8[4096]{0}', space=vmem, size = 0x1000, scoped, tag = 'input window, operand 1, single buffered']
    #allocation8 [shape = 's32[1]{0}', space=sflag, size = 0x4, scoped, tag = 'scoped memory for tpu_custom_call.1']
    #allocation9 [shape = 's32[1]{0}', space=sflag, size = 0x4, scoped, tag = 'scoped memory for tpu_custom_call.1']
    #allocation10 [shape = 'u8[4096]{0}', space=vmem, size = 0x1000, scoped, tag = 'input window, operand 2, single buffered']
    #allocation11 [shape = 's32[1]{0}', space=sflag, size = 0x4, scoped, tag = 'scoped memory for tpu_custom_call.1']
    #allocation12 [shape = 'u8[512]{0}', space=vmem, size = 0x400, scoped, tag = 'input window, operand 7, single buffered']
    #allocation13 [shape = 'u8[512]{0}', space=vmem, size = 0x400, scoped, tag = 'output window, operand 0, single buffered']
    %15 = vsyncpa [#allocation8], 0
    %16 = vsyncpa [#allocation11], 0
    %17 = vsyncpa [#allocation9], 0
    // Predicated region
    $region2: #{tpu_custom_call.1} parent=1 // pred_check
      _
    $region3: #{tpu_custom_call.1} parent=1 // pred_check_branch
      %19 = sbr.rel (0) target = $region5
    $region4: #{tpu_custom_call.1} parent=1 // pred_region
      _
    $region5: #{tpu_custom_call.1} parent=1 // pred_fallthru
      _
    // Predicated region
    $region6: #{tpu_custom_call.1} parent=1 // pred_check
      _
    $region7: #{tpu_custom_call.1} parent=1 // pred_check_branch
      %21 = sbr.rel (0) target = $region9
    $region8: #{tpu_custom_call.1} parent=1 // pred_region
      %s23 = ssub.s32 128, 128
      %24 = vsyncadd [#allocation8], %s23
      %s26 = sshll.u32 [#allocation7], 4
      %s27 = int_to_ptr.vmem [resolvable:$true] %s26
      %29 = dma.hbm_to_vmem [thread:$0]  %s1, 128, %s27, [#allocation8]
    $region9: #{tpu_custom_call.1} parent=1 // pred_fallthru
      _
    // Predicated region
    $region10: #{tpu_custom_call.1} parent=1 // pred_check
      _
    $region11: #{tpu_custom_call.1} parent=1 // pred_check_branch
      %31 = sbr.rel (0) target = $region13
    $region12: #{tpu_custom_call.1} parent=1 // pred_region
      %s33 = ssub.s32 128, 128
      %34 = vsyncadd [#allocation11], %s33
      %s36 = sshll.u32 [#allocation10], 4
      %s37 = int_to_ptr.vmem [resolvable:$true] %s36
      %39 = dma.hbm_to_vmem [thread:$0]  %s2, 128, %s37, [#allocation11]
    $region13: #{tpu_custom_call.1} parent=1 // pred_fallthru
      _
    // Predicated region
    $region14: #{tpu_custom_call.1} parent=1 // pred_check
      _
    $region15: #{tpu_custom_call.1} parent=1 // pred_check_branch
      %41 = sbr.rel (0) target = $region17
    $region16: #{tpu_custom_call.1} parent=1 // pred_region
      _
    $region17: #{tpu_custom_call.1} parent=1 // pred_fallthru
      _
    // Predicated region
    $region18: #{tpu_custom_call.1} parent=1 // pred_check
      _
    $region19: #{tpu_custom_call.1} parent=1 // pred_check_branch
      %43 = sbr.rel (0) target = $region21
    $region20: #{tpu_custom_call.1} parent=1 // pred_region
      _
    $region21: #{tpu_custom_call.1} parent=1 // pred_fallthru
      _
    // Predicated region
    $region22: #{tpu_custom_call.1} parent=1 // pred_check
      _
    $region23: #{tpu_custom_call.1} parent=1 // pred_check_branch
      %45 = sbr.rel (0) target = $region25
    $region24: #{tpu_custom_call.1} parent=1 // pred_region
      _
    $region25: #{tpu_custom_call.1} parent=1 // pred_fallthru
      _
    // Predicated region
    $region26: #{tpu_custom_call.1} parent=1 // pred_check
      _
    $region27: #{tpu_custom_call.1} parent=1 // pred_check_branch
      %47 = sbr.rel (0) target = $region29
    $region28: #{tpu_custom_call.1} parent=1 // pred_region
      _
    $region29: #{tpu_custom_call.1} parent=1 // pred_fallthru
      _
    // Predicated region
    $region30: #{tpu_custom_call.1} parent=1 // pred_check
      _
    $region31: #{tpu_custom_call.1} parent=1 // pred_check_branch
      %49 = sbr.rel (0) target = $region33
    $region32: #{tpu_custom_call.1} parent=1 // pred_region
      %s51 = ssub.s32 16, 16
      %52 = vsyncadd [#allocation11], %s51
      %s54 = sshll.u32 [#allocation12], 4
      %s55 = int_to_ptr.vmem [resolvable:$true] %s54
      %57 = dma.hbm_to_vmem [thread:$0]  %s7, 16, %s55, [#allocation11]
    $region33: #{tpu_custom_call.1} parent=1 // pred_fallthru
      _
    // Predicated region
    $region34: #{tpu_custom_call.1} parent=1 // pred_check
      _
    $region35: #{tpu_custom_call.1} parent=1 // pred_check_branch
      %59 = sbr.rel (0) target = $region37
    $region36: #{tpu_custom_call.1} parent=1 // pred_region
      _
    $region37: #{tpu_custom_call.1} parent=1 // pred_fallthru
      _
    // Predicated region
    $region38: #{tpu_custom_call.1} parent=1 // pred_check
      _
    $region39: #{tpu_custom_call.1} parent=1 // pred_check_branch
      %61 = sbr.rel (0) target = $region41
    $region40: #{tpu_custom_call.1} parent=1 // pred_region
      _
    $region41: #{tpu_custom_call.1} parent=1 // pred_fallthru
      _
    // Predicated region
    $region42: #{tpu_custom_call.1} parent=1 // pred_check
      _
    $region43: #{tpu_custom_call.1} parent=1 // pred_check_branch
      %63 = sbr.rel (0) target = $region45
    $region44: #{tpu_custom_call.1} parent=1 // pred_region
      %64 = dma.done [#allocation8], 128
    $region45: #{tpu_custom_call.1} parent=1 // pred_fallthru
      _
    // Predicated region
    $region46: #{tpu_custom_call.1} parent=1 // pred_check
      _
    $region47: #{tpu_custom_call.1} parent=1 // pred_check_branch
      %66 = sbr.rel (0) target = $region49
    $region48: #{tpu_custom_call.1} parent=1 // pred_region
      %67 = dma.done [#allocation11], 128
    $region49: #{tpu_custom_call.1} parent=1 // pred_fallthru
      _
    // Predicated region
    $region50: #{tpu_custom_call.1} parent=1 // pred_check
      _
    $region51: #{tpu_custom_call.1} parent=1 // pred_check_branch
      %69 = sbr.rel (0) target = $region53
    $region52: #{tpu_custom_call.1} parent=1 // pred_region
      %70 = dma.done [#allocation11], 16
    $region53: #{tpu_custom_call.1} parent=1 // pred_fallthru
      _
    %p71 = scmp.eq.s32.totalorder 0, 0
    // Predicated region
    $region54: #{tpu_custom_call.1} parent=1 // pred_check
      %p72 = pneg %p71
    $region55: #{tpu_custom_call.1} parent=1 // pred_check_branch
      %74 = sbr.rel (%p72) target = $region57
    $region56: #{tpu_custom_call.1} parent=1 // pred_region
      %vm75 = vcmask 0
      %76 = vst.msk [vmem:[#allocation2] sm:$0x1] %vm75, 0.0
      %77 = vst.msk [vmem:[#allocation3] sm:$0x1] %vm75, 0.0
      %78 = vst.msk [vmem:[#allocation4] sm:$0x1] %vm75, 0.0
      %79 = vst.msk [vmem:[#allocation5] sm:$0x1] %vm75, 0.0
      %80 = vst.msk [vmem:[#allocation6] sm:$0x1] %vm75, 0.0
    $region57: #{tpu_custom_call.1} parent=1 // pred_fallthru
      _
    %v81 = vld [vmem:[%s0] sm:$0xff]
    %v82 = vld [vmem:[#allocation7] sm:$0xff]
    %84 = vrot.lane.b32.xlu0 %v82, 123
    %v85 = vpop.permute.xlu0 %84
    %vm87 = vcmp.ge.f32.partialorder %v81, %v85
    %v88 = vsub.f32 %v81, %v85
    %v89 = vmul.f32 %v88, 10.0
    %v90 = vsel %vm87, %v89, 0.0
    %vm91 = vcmp.lt.f32.partialorder %v81, 0.0
    %v92 = vsub.f32 0.0, %v81
    %v93 = vmul.f32 %v92, 10.0
    %v94 = vsel %vm91, %v93, %v90
    %vm95 = vcmp.gt.f32.partialorder %v81, %v85
    %v96 = vsel %vm95, %v85, %v81
    %vm97 = vcmp.lt.f32.partialorder %v96, 0.0
    %v98 = vsel %vm97, 0.0, %v96
    %v99 = vld [vmem:[#allocation10] sm:$0xff]
    %v100 = vld [vmem:[%s3] sm:$0xff]
    %v101 = vld [vmem:[%s3 + $0x8] sm:$0x1f]
    %103 = vrot.lane.b32.xlu0 %v81, 126
    %v104 = vpop.permute.xlu0 %103
    %vm105 = vcmask 105472
    %v106 = vsel %vm105, %v104, 0
    %vm108 = vcmask 1044480
    %v110 = vsel %vm108, %v101, 0
    %112 = vmatprep.subr.mxu0 0.0
    %113 = vmatpush1.msra.mxu0 %v100
    %114 = vmatprep.subr.mxu0 0.0
    %115 = vmatpush1.msra.mxu0 %v110
    %116 = vmatprep.subr.mxu0 0.0
    %117 = vmatpush1.msra.mxu0 0.0
    %118 = vmatprep.subr.mxu0 0.0
    %119 = vmatpush1.msra.mxu0 0.0
    %120 = vmatprep.subr.mxu0 0.0
    %121 = vmatpush1.msra.mxu0 0.0
    %122 = vmatprep.subr.mxu0 0.0
    %123 = vmatpush1.msra.mxu0 0.0
    %124 = vmatprep.subr.mxu0 0.0
    %125 = vmatpush1.msra.mxu0 0.0
    %126 = vmatprep.subr.mxu0 0.0
    %127 = vmatpush1.msra.mxu0 0.0
    %128 = vmatprep.subr.mxu0 0.0
    %129 = vmatpush1.msra.mxu0 0.0
    %130 = vmatprep.subr.mxu0 0.0
    %131 = vmatpush1.msra.mxu0 0.0
    %132 = vmatprep.subr.mxu0 0.0
    %133 = vmatpush1.msra.mxu0 0.0
    %134 = vmatprep.subr.mxu0 0.0
    %135 = vmatpush1.msra.mxu0 0.0
    %136 = vmatprep.subr.mxu0 0.0
    %137 = vmatpush1.msra.mxu0 0.0
    %138 = vmatprep.subr.mxu0 0.0
    %139 = vmatpush1.msra.mxu0 0.0
    %140 = vmatprep.subr.mxu0 0.0
    %141 = vmatpush1.msra.mxu0 0.0
    %142 = vmatprep.subr.mxu0 0.0
    %143 = vmatpush1.msra.mxu0 0.0
    %144 = vmatprep.subr.mxu0 0.0
    %145 = vmatpush1.msra.mxu0 0.0
    %146 = vmatprep.subr.mxu0 0.0
    %147 = vmatpush1.msra.mxu0 0.0
    %148 = vmatprep.subr.mxu0 0.0
    %149 = vmatpush1.msra.mxu0 0.0
    %150 = vmatprep.subr.mxu0 0.0
    %151 = vmatpush1.msra.mxu0 0.0
    %152 = vmatprep.subr.mxu0 0.0
    %153 = vmatpush1.msra.mxu0 0.0
    %154 = vmatprep.subr.mxu0 0.0
    %155 = vmatpush1.msra.mxu0 0.0
    %156 = vmatprep.subr.mxu0 0.0
    %157 = vmatpush1.msra.mxu0 0.0
    %158 = vmatprep.subr.mxu0 0.0
    %159 = vmatpush1.msra.mxu0 0.0
    %160 = vmatprep.subr.mxu0 0.0
    %161 = vmatpush1.msra.mxu0 0.0
    %162 = vmatprep.subr.mxu0 0.0
    %163 = vmatpush1.msra.mxu0 0.0
    %164 = vmatprep.subr.mxu0 0.0
    %165 = vmatpush1.msra.mxu0 0.0
    %166 = vmatprep.subr.mxu0 0.0
    %167 = vmatpush1.msra.mxu0 0.0
    %168 = vmatprep.subr.mxu0 0.0
    %169 = vmatpush1.msra.mxu0 0.0
    %170 = vmatprep.subr.mxu0 0.0
    %171 = vmatpush1.msra.mxu0 0.0
    %172 = vmatprep.subr.mxu0 0.0
    %173 = vmatpush1.msra.mxu0 0.0
    %174 = vmatprep.subr.mxu0 0.0
    %175 = vmatpush1.msra.mxu0 0.0
    %176 = vmatprep.mubr.f32.mxu0 0.0
    %177 = vmatmul.mubr.f32.gmra.mrb[0].mxu0 %v106
    %v178 = vpop.f32.mrb[0].mxu0
    %v179 = vadd.f32 0.0, %v178
    %v180 = vpop.f32.mrb[0].mxu0
    %181 = vdwg.mxu0
    %vm182 = vcmask 64512
    %v183 = vsel %vm182, %v82, 0
    %185 = vmatprep.subr.mxu0 0.0
    %186 = vmatpush1.msra.mxu0 %v99
    %187 = vmatprep.subr.mxu0 0.0
    %188 = vmatpush1.msra.mxu0 0.0
    %189 = vmatprep.subr.mxu0 0.0
    %190 = vmatpush1.msra.mxu0 0.0
    %191 = vmatprep.subr.mxu0 0.0
    %192 = vmatpush1.msra.mxu0 0.0
    %193 = vmatprep.subr.mxu0 0.0
    %194 = vmatpush1.msra.mxu0 0.0
    %195 = vmatprep.subr.mxu0 0.0
    %196 = vmatpush1.msra.mxu0 0.0
    %197 = vmatprep.subr.mxu0 0.0
    %198 = vmatpush1.msra.mxu0 0.0
    %199 = vmatprep.subr.mxu0 0.0
    %200 = vmatpush1.msra.mxu0 0.0
    %201 = vmatprep.subr.mxu0 0.0
    %202 = vmatpush1.msra.mxu0 0.0
    %203 = vmatprep.subr.mxu0 0.0
    %204 = vmatpush1.msra.mxu0 0.0
    %205 = vmatprep.subr.mxu0 0.0
    %206 = vmatpush1.msra.mxu0 0.0
    %207 = vmatprep.subr.mxu0 0.0
    %208 = vmatpush1.msra.mxu0 0.0
    %209 = vmatprep.subr.mxu0 0.0
    %210 = vmatpush1.msra.mxu0 0.0
    %211 = vmatprep.subr.mxu0 0.0
    %212 = vmatpush1.msra.mxu0 0.0
    %213 = vmatprep.subr.mxu0 0.0
    %214 = vmatpush1.msra.mxu0 0.0
    %215 = vmatprep.subr.mxu0 0.0
    %216 = vmatpush1.msra.mxu0 0.0
    %217 = vmatprep.subr.mxu0 0.0
    %218 = vmatpush1.msra.mxu0 0.0
    %219 = vmatprep.subr.mxu0 0.0
    %220 = vmatpush1.msra.mxu0 0.0
    %221 = vmatprep.subr.mxu0 0.0
    %222 = vmatpush1.msra.mxu0 0.0
    %223 = vmatprep.subr.mxu0 0.0
    %224 = vmatpush1.msra.mxu0 0.0
    %225 = vmatprep.subr.mxu0 0.0
    %226 = vmatpush1.msra.mxu0 0.0
    %227 = vmatprep.subr.mxu0 0.0
    %228 = vmatpush1.msra.mxu0 0.0
    %229 = vmatprep.subr.mxu0 0.0
    %230 = vmatpush1.msra.mxu0 0.0
    %231 = vmatprep.subr.mxu0 0.0
    %232 = vmatpush1.msra.mxu0 0.0
    %233 = vmatprep.subr.mxu0 0.0
    %234 = vmatpush1.msra.mxu0 0.0
    %235 = vmatprep.subr.mxu0 0.0
    %236 = vmatpush1.msra.mxu0 0.0
    %237 = vmatprep.subr.mxu0 0.0
    %238 = vmatpush1.msra.mxu0 0.0
    %239 = vmatprep.subr.mxu0 0.0
    %240 = vmatpush1.msra.mxu0 0.0
    %241 = vmatprep.subr.mxu0 0.0
    %242 = vmatpush1.msra.mxu0 0.0
    %243 = vmatprep.subr.mxu0 0.0
    %244 = vmatpush1.msra.mxu0 0.0
    %245 = vmatprep.subr.mxu0 0.0
    %246 = vmatpush1.msra.mxu0 0.0
    %247 = vmatprep.subr.mxu0 0.0
    %248 = vmatpush1.msra.mxu0 0.0
    %249 = vmatprep.mubr.f32.mxu0 0.0
    %250 = vmatmul.mubr.f32.gmra.mrb[0].mxu0 %v183
    %v251 = vpop.f32.mrb[0].mxu0
    %v252 = vadd.f32 %v179, %v251
    %v253 = vpop.f32.mrb[0].mxu0
    %254 = vdwg.mxu0
    %v255 = vsub.f32 %v98, %v81
    %v256 = vld [vmem:[%s4] sm:$0x1]
    %258 = vset.pattern.permute.xlu0 2
    %259 = vperm.xlu0 %258, %v255
    %v260 = vpop.permute.xlu0 %259
    %v263 = vlaneseq
    %v264 = vshrl.u32 %v263, 7
    %v265 = vsub.s32 0, %v264
    %v266 = vrot.slane %v256, %v265
    %v268 = vmul.f32 %v260, %v266
    %v269 = vadd.f32 %v252, %v268
    %v270 = vld [vmem:[%s5] sm:$0x1]
    %v272 = vlaneseq
    %v273 = vshrl.u32 %v272, 7
    %v274 = vsub.s32 0, %v273
    %v275 = vrot.slane %v270, %v274
    %v277 = vadd.f32 %v269, %v275
    %v278 = vmax.f32 %v277, 0.0
    %v279 = vld [vmem:[%s6] sm:$0xff]
    %v280 = vld [vmem:[%s6 + $0x8] sm:$0xff]
    %v281 = vld [vmem:[%s6 + $0x10] sm:$0xff]
    %v282 = vld [vmem:[%s6 + $0x18] sm:$0xff]
    %v283 = vld [vmem:[#allocation12] sm:$0x1]
    %v285 = vlaneseq
    %v286 = vshrl.u32 %v285, 7
    %v287 = vsub.s32 0, %v286
    %v288 = vrot.slane %v283, %v287
    %vm290 = vcmask 261120
    %v292 = vsel %vm290, %v278, 0
    %294 = vmatprep.subr.mxu0 0.0
    %295 = vmatpush1.msra.mxu0 %v279
    %296 = vmatprep.subr.mxu0 0.0
    %297 = vmatpush1.msra.mxu0 %v280
    %298 = vmatprep.subr.mxu0 0.0
    %299 = vmatpush1.msra.mxu0 %v281
    %300 = vmatprep.subr.mxu0 0.0
    %301 = vmatpush1.msra.mxu0 %v282
    %302 = vmatprep.subr.mxu0 0.0
    %303 = vmatpush1.msra.mxu0 0.0
    %304 = vmatprep.subr.mxu0 0.0
    %305 = vmatpush1.msra.mxu0 0.0
    %306 = vmatprep.subr.mxu0 0.0
    %307 = vmatpush1.msra.mxu0 0.0
    %308 = vmatprep.subr.mxu0 0.0
    %309 = vmatpush1.msra.mxu0 0.0
    %310 = vmatprep.subr.mxu0 0.0
    %311 = vmatpush1.msra.mxu0 0.0
    %312 = vmatprep.subr.mxu0 0.0
    %313 = vmatpush1.msra.mxu0 0.0
    %314 = vmatprep.subr.mxu0 0.0
    %315 = vmatpush1.msra.mxu0 0.0
    %316 = vmatprep.subr.mxu0 0.0
    %317 = vmatpush1.msra.mxu0 0.0
    %318 = vmatprep.subr.mxu0 0.0
    %319 = vmatpush1.msra.mxu0 0.0
    %320 = vmatprep.subr.mxu0 0.0
    %321 = vmatpush1.msra.mxu0 0.0
    %322 = vmatprep.subr.mxu0 0.0
    %323 = vmatpush1.msra.mxu0 0.0
    %324 = vmatprep.subr.mxu0 0.0
    %325 = vmatpush1.msra.mxu0 0.0
    %326 = vmatprep.subr.mxu0 0.0
    %327 = vmatpush1.msra.mxu0 0.0
    %328 = vmatprep.subr.mxu0 0.0
    %329 = vmatpush1.msra.mxu0 0.0
    %330 = vmatprep.subr.mxu0 0.0
    %331 = vmatpush1.msra.mxu0 0.0
    %332 = vmatprep.subr.mxu0 0.0
    %333 = vmatpush1.msra.mxu0 0.0
    %334 = vmatprep.subr.mxu0 0.0
    %335 = vmatpush1.msra.mxu0 0.0
    %336 = vmatprep.subr.mxu0 0.0
    %337 = vmatpush1.msra.mxu0 0.0
    %338 = vmatprep.subr.mxu0 0.0
    %339 = vmatpush1.msra.mxu0 0.0
    %340 = vmatprep.subr.mxu0 0.0
    %341 = vmatpush1.msra.mxu0 0.0
    %342 = vmatprep.subr.mxu0 0.0
    %343 = vmatpush1.msra.mxu0 0.0
    %344 = vmatprep.subr.mxu0 0.0
    %345 = vmatpush1.msra.mxu0 0.0
    %346 = vmatprep.subr.mxu0 0.0
    %347 = vmatpush1.msra.mxu0 0.0
    %348 = vmatprep.subr.mxu0 0.0
    %349 = vmatpush1.msra.mxu0 0.0
    %350 = vmatprep.subr.mxu0 0.0
    %351 = vmatpush1.msra.mxu0 0.0
    %352 = vmatprep.subr.mxu0 0.0
    %353 = vmatpush1.msra.mxu0 0.0
    %354 = vmatprep.subr.mxu0 0.0
    %355 = vmatpush1.msra.mxu0 0.0
    %356 = vmatprep.subr.mxu0 0.0
    %357 = vmatpush1.msra.mxu0 0.0
    %358 = vmatprep.mubr.f32.mxu0 0.0
    %359 = vmatmul.mubr.f32.gmra.mrb[0].mxu0 %v292
    %v360 = vpop.f32.mrb[0].mxu0
    %v361 = vadd.f32 %v288, %v360
    %v362 = vpop.f32.mrb[0].mxu0
    %363 = vdwg.mxu0
    %v364 = vmax.f32 %v361, 0.0
    %v365 = vld [vmem:[%s8] sm:$0xff]
    %v366 = vld [vmem:[%s8 + $0x8] sm:$0xff]
    %v367 = vld [vmem:[%s8 + $0x10] sm:$0xff]
    %v368 = vld [vmem:[%s8 + $0x18] sm:$0xff]
    %v369 = vld [vmem:[%s9] sm:$0x1]
    %v371 = vlaneseq
    %v372 = vshrl.u32 %v371, 7
    %v373 = vsub.s32 0, %v372
    %v374 = vrot.slane %v369, %v373
    %v377 = vsel %vm290, %v364, 0
    %379 = vmatprep.subr.mxu0 0.0
    %380 = vmatpush1.msra.mxu0 %v365
    %381 = vmatprep.subr.mxu0 0.0
    %382 = vmatpush1.msra.mxu0 %v366
    %383 = vmatprep.subr.mxu0 0.0
    %384 = vmatpush1.msra.mxu0 %v367
    %385 = vmatprep.subr.mxu0 0.0
    %386 = vmatpush1.msra.mxu0 %v368
    %387 = vmatprep.subr.mxu0 0.0
    %388 = vmatpush1.msra.mxu0 0.0
    %389 = vmatprep.subr.mxu0 0.0
    %390 = vmatpush1.msra.mxu0 0.0
    %391 = vmatprep.subr.mxu0 0.0
    %392 = vmatpush1.msra.mxu0 0.0
    %393 = vmatprep.subr.mxu0 0.0
    %394 = vmatpush1.msra.mxu0 0.0
    %395 = vmatprep.subr.mxu0 0.0
    %396 = vmatpush1.msra.mxu0 0.0
    %397 = vmatprep.subr.mxu0 0.0
    %398 = vmatpush1.msra.mxu0 0.0
    %399 = vmatprep.subr.mxu0 0.0
    %400 = vmatpush1.msra.mxu0 0.0
    %401 = vmatprep.subr.mxu0 0.0
    %402 = vmatpush1.msra.mxu0 0.0
    %403 = vmatprep.subr.mxu0 0.0
    %404 = vmatpush1.msra.mxu0 0.0
    %405 = vmatprep.subr.mxu0 0.0
    %406 = vmatpush1.msra.mxu0 0.0
    %407 = vmatprep.subr.mxu0 0.0
    %408 = vmatpush1.msra.mxu0 0.0
    %409 = vmatprep.subr.mxu0 0.0
    %410 = vmatpush1.msra.mxu0 0.0
    %411 = vmatprep.subr.mxu0 0.0
    %412 = vmatpush1.msra.mxu0 0.0
    %413 = vmatprep.subr.mxu0 0.0
    %414 = vmatpush1.msra.mxu0 0.0
    %415 = vmatprep.subr.mxu0 0.0
    %416 = vmatpush1.msra.mxu0 0.0
    %417 = vmatprep.subr.mxu0 0.0
    %418 = vmatpush1.msra.mxu0 0.0
    %419 = vmatprep.subr.mxu0 0.0
    %420 = vmatpush1.msra.mxu0 0.0
    %421 = vmatprep.subr.mxu0 0.0
    %422 = vmatpush1.msra.mxu0 0.0
    %423 = vmatprep.subr.mxu0 0.0
    %424 = vmatpush1.msra.mxu0 0.0
    %425 = vmatprep.subr.mxu0 0.0
    %426 = vmatpush1.msra.mxu0 0.0
    %427 = vmatprep.subr.mxu0 0.0
    %428 = vmatpush1.msra.mxu0 0.0
    %429 = vmatprep.subr.mxu0 0.0
    %430 = vmatpush1.msra.mxu0 0.0
    %431 = vmatprep.subr.mxu0 0.0
    %432 = vmatpush1.msra.mxu0 0.0
    %433 = vmatprep.subr.mxu0 0.0
    %434 = vmatpush1.msra.mxu0 0.0
    %435 = vmatprep.subr.mxu0 0.0
    %436 = vmatpush1.msra.mxu0 0.0
    %437 = vmatprep.subr.mxu0 0.0
    %438 = vmatpush1.msra.mxu0 0.0
    %439 = vmatprep.subr.mxu0 0.0
    %440 = vmatpush1.msra.mxu0 0.0
    %441 = vmatprep.subr.mxu0 0.0
    %442 = vmatpush1.msra.mxu0 0.0
    %443 = vmatprep.mubr.f32.mxu0 0.0
    %444 = vmatmul.mubr.f32.gmra.mrb[0].mxu0 %v377
    %v445 = vpop.f32.mrb[0].mxu0
    %v446 = vadd.f32 %v374, %v445
    %v447 = vpop.f32.mrb[0].mxu0
    %448 = vdwg.mxu0
    %v449 = vrcp.pop %v81
    %450 = vset.pattern.permute.xlu0 0
    %451 = vperm.xlu0 %450, %v81
    %v452 = vpop.permute.xlu0 %451
    %v454 = vsub.f32 %v446, %v452
    %456 = vset.pattern.permute.xlu0 1
    %457 = vperm.xlu0 %456, %v449
    %v458 = vpop.permute.xlu0 %457
    %v460 = vmul.f32 %v454, %v458
    %v461 = vmul.f32 %v460, 1.442695
    %v462 = vpow.pop %v461
    %v463 = vsub.f32 %v462, 1.0
    %vm464 = vcmask 31744
    %v465 = vsel %vm464, %v463, 0.0
    %466 = vadd.xlane.f32.xlu0 %v465
    %v467 = vpop.xlane.xlu0 %466
    %v468 = vadd.f32 %v82, %v467
    %s469 = smul.u32 0, 8
    %v470 = vlaneseq
    %v471 = vshrl.u32 %v470, 7
    %v472 = vstv %s469
    %v473 = vadd.s32 %v472, %v471
    %vm474 = vcmp.lt.s32.totalorder %v473, 8
    %v475 = vld [vmem:[#allocation2] sm:$0x1]
    %v476 = vmul.f32 %v81, %v81
    %478 = vrot.lane.b32.xlu0 %v94, 126
    %v479 = vpop.permute.xlu0 %478
    %v481 = vadd.f32 %v476, %v479
    %v482 = vsel %vm474, %v481, 0.0
    %vm483 = vcmask 7168
    %v484 = vsel %vm483, %v482, 0.0
    %v485 = vrot.slane %v484, 4
    %v486 = vadd.f32 %v484, %v485
    %v487 = vrot.slane %v486, 2
    %v488 = vadd.f32 %v486, %v487
    %v489 = vrot.slane %v488, 1
    %v490 = vadd.f32 %v488, %v489
    %v491 = vadd.f32 %v475, %v490
    %vm492 = vcmask 0
    %493 = vst.msk [vmem:[#allocation2] sm:$0x1] %vm492, %v491
    %v494 = vld [vmem:[#allocation3] sm:$0x1]
    %495 = vrot.lane.b32.xlu0 %v81, 127
    %v496 = vpop.permute.xlu0 %495
    %v498 = vmul.f32 %v81, %v496
    %v499 = vsel %vm474, %v498, 0.0
    %v500 = vsel %vm483, %v499, 0.0
    %v501 = vrot.slane %v500, 4
    %v502 = vadd.f32 %v500, %v501
    %v503 = vrot.slane %v502, 2
    %v504 = vadd.f32 %v502, %v503
    %v505 = vrot.slane %v504, 1
    %v506 = vadd.f32 %v504, %v505
    %v507 = vadd.f32 %v494, %v506
    %508 = vst.msk [vmem:[#allocation3] sm:$0x1] %vm492, %v507
    %v509 = vld [vmem:[#allocation4] sm:$0x1]
    %v510 = vsel %vm474, %v476, 0.0
    %vm511 = vcmask 15368
    %v512 = vsel %vm511, %v510, 0.0
    %v513 = vrot.slane %v512, 4
    %v514 = vadd.f32 %v512, %v513
    %v515 = vrot.slane %v514, 2
    %v516 = vadd.f32 %v514, %v515
    %v517 = vrot.slane %v516, 1
    %v518 = vadd.f32 %v516, %v517
    %v521 = vunpack.c.l.s4 1966171168
    %v522 = vunpack.c.0.s8 %v521
    %v523 = vlaneseq
    %v524 = vshrl.u32 %v523, 7
    %v525 = vsub.s32 %v522, %v524
    %v526 = vrot.slane %v518, %v525
    %v528 = vunpack.c.l.s4 1966171168
    %v529 = vunpack.c.0.s8 %v528
    %v530 = vlaneseq
    %v531 = vshrl.u32 %v530, 7
    %v532 = vsub.s32 %v529, %v531
    %v533 = vrot.slane %v526, %v532
    %534 = vrot.lane.b32.xlu0 %v533, 127
    %v535 = vpop.permute.xlu0 %534
    %v537 = vadd.f32 %v509, %v535
    %538 = vst.msk [vmem:[#allocation4] sm:$0x1] %vm492, %v537
    %v539 = vld [vmem:[#allocation5] sm:$0x1]
    %v540 = vsel %vm474, %v468, 0.0
    %vm541 = vcmask 72768
    %v542 = vsel %vm541, %v540, 0.0
    %v543 = vrot.slane %v542, 4
    %v544 = vadd.f32 %v542, %v543
    %v545 = vrot.slane %v544, 2
    %v546 = vadd.f32 %v544, %v545
    %v547 = vrot.slane %v546, 1
    %v548 = vadd.f32 %v546, %v547
    %v551 = vunpack.c.l.s4 1966171168
    %v552 = vunpack.c.0.s8 %v551
    %v553 = vlaneseq
    %v554 = vshrl.u32 %v553, 7
    %v555 = vsub.s32 %v552, %v554
    %v556 = vrot.slane %v548, %v555
    %v558 = vunpack.c.l.s4 1966171168
    %v559 = vunpack.c.0.s8 %v558
    %v560 = vlaneseq
    %v561 = vshrl.u32 %v560, 7
    %v562 = vsub.s32 %v559, %v561
    %v563 = vrot.slane %v556, %v562
    %564 = vrot.lane.b32.xlu0 %v563, 120
    %v565 = vpop.permute.xlu0 %564
    %v567 = vadd.f32 %v539, %v565
    %568 = vst.msk [vmem:[#allocation5] sm:$0x1] %vm492, %v567
    %v569 = vld [vmem:[#allocation6] sm:$0x1]
    %v570 = vmul.f32 %v468, %v468
    %v571 = vsel %vm474, %v570, 0.0
    %v572 = vsel %vm541, %v571, 0.0
    %v573 = vrot.slane %v572, 4
    %v574 = vadd.f32 %v572, %v573
    %v575 = vrot.slane %v574, 2
    %v576 = vadd.f32 %v574, %v575
    %v577 = vrot.slane %v576, 1
    %v578 = vadd.f32 %v576, %v577
    %v581 = vunpack.c.l.s4 1966171168
    %v582 = vunpack.c.0.s8 %v581
    %v583 = vlaneseq
    %v584 = vshrl.u32 %v583, 7
    %v585 = vsub.s32 %v582, %v584
    %v586 = vrot.slane %v578, %v585
    %v588 = vunpack.c.l.s4 1966171168
    %v589 = vunpack.c.0.s8 %v588
    %v590 = vlaneseq
    %v591 = vshrl.u32 %v590, 7
    %v592 = vsub.s32 %v589, %v591
    %v593 = vrot.slane %v586, %v592
    %594 = vrot.lane.b32.xlu0 %v593, 120
    %v595 = vpop.permute.xlu0 %594
    %v597 = vadd.f32 %v569, %v595
    %598 = vst.msk [vmem:[#allocation6] sm:$0x1] %vm492, %v597
    // Predicated region
    $region58: #{tpu_custom_call.1} parent=1 // pred_check
      %p599 = pneg %p71
    $region59: #{tpu_custom_call.1} parent=1 // pred_check_branch
      %601 = sbr.rel (%p599) target = $region61
    $region60: #{tpu_custom_call.1} parent=1 // pred_region
      %v602 = vld [vmem:[#allocation2] sm:$0x1]
      %v603 = vmul.f32 %v602, 8.0
      %v604 = vld [vmem:[#allocation5] sm:$0x1]
      %v605 = vmul.f32 %v604, 2.0
      %v606 = vld [vmem:[#allocation3] sm:$0x1]
      %v607 = vmul.f32 %v605, %v606
      %v608 = vadd.f32 %v603, %v607
      %v609 = vld [vmem:[#allocation6] sm:$0x1]
      %v610 = vld [vmem:[#allocation4] sm:$0x1]
      %v611 = vmul.f32 %v609, %v610
      %v612 = vadd.f32 %v608, %v611
      %v613 = vrcp.pop 64.0
      %v614 = vmul.f32 %v612, %v613
      %615 = vst.msk [vmem:[#allocation13] sm:$0x1] %vm492, %v614
    $region61: #{tpu_custom_call.1} parent=1 // pred_fallthru
      _
    // Predicated region
    $region62: #{tpu_custom_call.1} parent=1 // pred_check
      _
    $region63: #{tpu_custom_call.1} parent=1 // pred_check_branch
      %617 = sbr.rel (0) target = $region65
    $region64: #{tpu_custom_call.1} parent=1 // pred_region
      %s619 = ssub.s32 16, 16
      %620 = vsyncadd [#allocation9], %s619
      %s622 = sshll.u32 [#allocation13], 4
      %s623 = int_to_ptr.vmem [resolvable:$true] %s622
      %625 = dma.vmem_to_hbm [thread:$0]  %s623, 16, %s10, [#allocation9]
    $region65: #{tpu_custom_call.1} parent=1 // pred_fallthru
      _
    // Predicated region
    $region66: #{tpu_custom_call.1} parent=1 // pred_check
      _
    $region67: #{tpu_custom_call.1} parent=1 // pred_check_branch
      %627 = sbr.rel (0) target = $region69
    $region68: #{tpu_custom_call.1} parent=1 // pred_region
      %628 = dma.done [#allocation9], 16
    $region69: #{tpu_custom_call.1} parent=1 // pred_fallthru
      _
    %629 = vsyncpa [#allocation8], 1
    %630 = vsyncpa [#allocation11], 1
    %631 = vsyncpa [#allocation9], 1

</llo_original>
